<compile_context>
chip_gen: v7x
topology: tpu7x:2x2x1
jax: 0.10.0
libtpu: 0.0.40
codegen_flags: <defaults>
</compile_context>

<pallas_src>
import functools

import jax
import jax.numpy as jnp
from jax.experimental import pallas as pl
from jax.experimental.pallas import tpu as pltpu


def bottleneck_kernel(x_ref, w1_ref, w2_ref, out_ref, stage_ref, im_ref,
                      *, H, W, L, LPAD, SLOT, add):
    """One lane-dense slab of NB whole images per grid step.

    x_ref    : (C1, L)         input slab, channels on sublanes, L = NB*H*W lanes
    w1_ref   : (Cm, 10*SLOT)   conv1 weights: [bias slot | 9 tap slots], im2col layout
    w2_ref   : (C2, 10*SLOT)   conv2 weights, same layout
    out_ref  : (C2, L)
    stage_ref: (Cmax, LPAD + L + RPAD)  staging scratch for shifted tap reads
    im_ref   : (10*SLOT, L)    im2col scratch (row 0 = ones -> bias)
    """
    HW = H * W
    lane = jax.lax.broadcasted_iota(jnp.int32, (1, L), 1)
    if (W & (W - 1)) == 0 and (HW & (HW - 1)) == 0:        # pow2 fast path
        col = jnp.bitwise_and(lane, W - 1)
        row = jnp.right_shift(jnp.bitwise_and(lane, HW - 1), (W - 1).bit_length())
    else:
        col = lane % W
        row = (lane % HW) // W
    # Per-tap validity (also kills cross-image leakage at slab seams).
    row_ok = {-1: row >= 1, 0: None, 1: row <= H - 2}
    col_ok = {-1: col >= 1, 0: None, 1: col <= W - 2}

    # Zero the im2col scratch once per step (covers the bias slot's pad rows
    # and the unused tail of each tap slot; matching weight columns are zero,
    # and zero-not-garbage keeps NaNs out of the dot), then write the ones row
    # that realises the bias.  Both stores are lane-aligned full-width stores.
    im_ref[...] = jnp.zeros(im_ref.shape, jnp.float32)
    im_ref[0:1, :] = jnp.ones((1, L), jnp.float32)

    def conv3x3(src, w_ref):
        """src: (Cin, L) f32 -> (Cout, L) f32, bias included, no activation."""
        cin = src.shape[0]
        # Lane-aligned staging store; the +-(W+1) lane margins are never
        # zeroed -- every position a shifted read pulls from them is masked.
        stage_ref[:cin, LPAD:LPAD + L] = src
        t = 0
        for dh in (-1, 0, 1):
            for dw in (-1, 0, 1):
                s = dh * W + dw
                xs = stage_ref[:cin, LPAD + s:LPAD + s + L]     # shifted tap
                rm, cm = row_ok[dh], col_ok[dw]
                if rm is not None and cm is not None:
                    m = jnp.logical_and(rm, cm)
                else:
                    m = rm if rm is not None else cm
                if m is not None:
                    xs = jnp.where(m, xs, 0.0)
                r0 = SLOT * (t + 1)                             # 8-aligned slot
                im_ref[r0:r0 + cin, :] = xs
                t += 1
        # Single MXU contraction per conv: (Cout, K) @ (K, L), K = 10*SLOT.
        return jax.lax.dot_general(
            w_ref[...], im_ref[...], (((1,), (0,)), ((), ())),
            preferred_element_type=jnp.float32)

    xv = x_ref[...]                                             # (C1, L)

    y1 = conv3x3(xv, w1_ref)
    y1 = y1 * jax.nn.sigmoid(y1)                                # SiLU (EUP)
    y2 = conv3x3(y1, w2_ref)
    y2 = y2 * jax.nn.sigmoid(y2)
    if add:
        y2 = y2 + xv                                            # shortcut (c1 == c2)
    out_ref[...] = y2.astype(out_ref.dtype)                     # lane-dense vst


def bottleneck_pallas(x_nchw, w1, b1, w2, b2, *, shortcut=True):
    """x_nchw: (N, C1, H, W) float32; weights HWIO. Returns (N, C2, H, W)."""
    x = x_nchw.astype(jnp.float32)
    N, C1, H, W = x.shape
    assert w1.shape[0] == 3 and w1.shape[1] == 3 and w1.shape[2] == C1
    Cm = w1.shape[3]
    assert w2.shape[0] == 3 and w2.shape[1] == 3 and w2.shape[2] == Cm
    C2 = w2.shape[3]
    HW = H * W
    add = bool(shortcut) and (C1 == C2)

    # Batch flattened onto the lane axis: (N, C, H, W) -> (C, N*H*W).
    x_cl = jnp.transpose(x, (1, 0, 2, 3)).reshape(C1, N * HW)

    # im2col weight layout: SLOT-column bias slot (col 0 = bias, rest zero),
    # then 9 tap slots of SLOT columns; first Cin columns of slot t hold that
    # tap's (Cout, Cin) matrix (t = 3*kh + kw), rest zero so stale/zero scratch
    # rows are inert.
    SLOT = max(8, ((max(C1, Cm) + 7) // 8) * 8)
    K = SLOT * 10

    def flatten_w(w, b, cin, cout):
        wt = jnp.transpose(w.astype(jnp.float32), (3, 0, 1, 2)).reshape(cout, 9, cin)
        slots = jnp.zeros((cout, 9, SLOT), jnp.float32).at[:, :, :cin].set(wt)
        head = jnp.zeros((cout, SLOT), jnp.float32).at[:, 0].set(b.astype(jnp.float32))
        return jnp.concatenate([head, slots.reshape(cout, 9 * SLOT)], axis=1)

    w1a = flatten_w(w1, b1, C1, Cm)      # (Cm, K)
    w2a = flatten_w(w2, b2, Cm, C2)      # (C2, K)

    # >= 2 "parallel" steps (two v7x TensorCores) while each step still takes
    # a fat lane-dense slab of NB whole images.
    G = 2 if (N >= 2 and N % 2 == 0) else 1
    NB = N // G
    L = NB * HW
    assert G == 1 or L % 128 == 0, "per-step lane extent should be a multiple of 128"

    LPAD = 128                           # lane-aligned staging offset, >= W + 1
    RPAD = 128
    assert W + 1 <= LPAD and W + 1 <= RPAD
    Cmax = max(C1, Cm)

    kernel = functools.partial(bottleneck_kernel, H=H, W=W, L=L,
                               LPAD=LPAD, SLOT=SLOT, add=add)

    flops = 2 * N * HW * K * (Cm + C2)
    transcendentals = N * HW * (Cm + C2)
    bytes_accessed = 4 * (N * HW * (C1 + C2) + int(w1a.size) + int(w2a.size))

    out = pl.pallas_call(
        kernel,
        out_shape=jax.ShapeDtypeStruct((C2, N * HW), jnp.float32),
        grid_spec=pltpu.PrefetchScalarGridSpec(
            num_scalar_prefetch=0,
            grid=(G,),
            in_specs=[
                pl.BlockSpec((C1, L), lambda g: (0, g)),
                pl.BlockSpec((Cm, K), lambda g: (0, 0)),
                pl.BlockSpec((C2, K), lambda g: (0, 0)),
            ],
            out_specs=pl.BlockSpec((C2, L), lambda g: (0, g)),
            scratch_shapes=[
                pltpu.VMEM((Cmax, LPAD + L + RPAD), jnp.float32),
                pltpu.VMEM((K, L), jnp.float32),
            ],
        ),
        compiler_params=pltpu.CompilerParams(
            dimension_semantics=("parallel",)),
        cost_estimate=pl.CostEstimate(
            flops=flops, transcendentals=transcendentals,
            bytes_accessed=bytes_accessed),
    )(x_cl, w1a, w2a)

    # (C2, N*H*W) -> (N, C2, H, W)
    return jnp.transpose(out.reshape(C2, N, H, W), (1, 0, 2, 3))


def bottleneck_reference(x_nchw, w1, b1, w2, b2, *, shortcut=True):
    """Pure-JAX reference (NCHW activations, HWIO weights, BN omitted)."""
    x = x_nchw.astype(jnp.float32)
    add = bool(shortcut) and (x.shape[1] == w2.shape[3])

    def conv_silu(h, w, b):
        y = jax.lax.conv_general_dilated(
            h, w.astype(jnp.float32), window_strides=(1, 1), padding="SAME",
            dimension_numbers=("NCHW", "HWIO", "NCHW"))
        y = y + b.astype(jnp.float32).reshape(1, -1, 1, 1)
        return y * jax.nn.sigmoid(y)

    y = conv_silu(conv_silu(x, w1, b1), w2, b2)
    return x + y if add else y


if __name__ == "__main__":
    # Bottleneck(c1=4, c2=4, shortcut=True, g=1, k=(3, 3), e=0.5) -> c_ = 2
    N, C1, C2, H, W = 2, 4, 4, 16, 16
    Cm = int(C2 * 0.5)

    key = jax.random.PRNGKey(0)
    k0, k1, k2, k3, k4 = jax.random.split(key, 5)
    x = jax.random.normal(k0, (N, C1, H, W), jnp.float32)
    # Deterministic synthetic weights (HWIO); small scale keeps SiLU well-behaved.
    w1 = 0.2 * jax.random.normal(k1, (3, 3, C1, Cm), jnp.float32)
    b1 = 0.1 * jax.random.normal(k2, (Cm,), jnp.float32)
    w2 = 0.2 * jax.random.normal(k3, (3, 3, Cm, C2), jnp.float32)
    b2 = 0.1 * jax.random.normal(k4, (C2,), jnp.float32)

    out = bottleneck_pallas(x, w1, b1, w2, b2, shortcut=True)
    out = jax.block_until_ready(out)

    ref = bottleneck_reference(x, w1, b1, w2, b2, shortcut=True)
    ref = jax.block_until_ready(ref)

    assert out.shape == (N, C2, H, W), out.shape
    assert jnp.allclose(out, ref, atol=1e-4, rtol=1e-4), (
        float(jnp.max(jnp.abs(out - ref))))
    print("KERNEL_OK")
</pallas_src>

<mosaic_0001>
module attributes {stable_mosaic.version = 11 : i64} {
  func.func @bottleneck_kernel(%arg0: i32, %arg1: memref<4x256xf32, #tpu.memory_space<vmem>>, %arg2: memref<2x80xf32, #tpu.memory_space<vmem>>, %arg3: memref<4x80xf32, #tpu.memory_space<vmem>>, %arg4: memref<4x256xf32, #tpu.memory_space<vmem>>, %arg5: memref<4x512xf32, #tpu.memory_space<vmem>>, %arg6: memref<80x256xf32, #tpu.memory_space<vmem>>) attributes {dimension_semantics = [#tpu.dimension_semantics<parallel>], iteration_bounds = array<i64: 2>, scalar_prefetch = 0 : i64, scratch_operands = 2 : i64, tpu.core_type = #tpu.core_type<tc>, window_params = [{transform_indices = @transform_0, window_bounds = array<i64: 4, 256>}, {pipeline_mode = #tpu.pipeline_mode<synchronous>, transform_indices = @transform_1, window_bounds = array<i64: 2, 80>}, {pipeline_mode = #tpu.pipeline_mode<synchronous>, transform_indices = @transform_2, window_bounds = array<i64: 4, 80>}, {transform_indices = @transform_3, window_bounds = array<i64: 4, 256>}]} {
    %0 = tpu.iota {dimensions = array<i32: 1>} : vector<1x256xi32>
    %c15_i32 = arith.constant 15 : i32
    %1 = vector.broadcast %c15_i32 : i32 to vector<1x256xi32>
    %2 = arith.andi %0, %1 : vector<1x256xi32>
    %c255_i32 = arith.constant 255 : i32
    %3 = vector.broadcast %c255_i32 : i32 to vector<1x256xi32>
    %4 = arith.andi %0, %3 : vector<1x256xi32>
    %c4_i32 = arith.constant 4 : i32
    %5 = vector.broadcast %c4_i32 : i32 to vector<1x256xi32>
    %6 = arith.shrsi %4, %5 : vector<1x256xi32>
    %c1_i32 = arith.constant 1 : i32
    %7 = vector.broadcast %c1_i32 : i32 to vector<1x256xi32>
    %8 = arith.cmpi sge, %6, %7 : vector<1x256xi32>
    %c14_i32 = arith.constant 14 : i32
    %9 = vector.broadcast %c14_i32 : i32 to vector<1x256xi32>
    %10 = arith.cmpi sle, %6, %9 : vector<1x256xi32>
    %c1_i32_0 = arith.constant 1 : i32
    %11 = vector.broadcast %c1_i32_0 : i32 to vector<1x256xi32>
    %12 = arith.cmpi sge, %2, %11 : vector<1x256xi32>
    %c14_i32_1 = arith.constant 14 : i32
    %13 = vector.broadcast %c14_i32_1 : i32 to vector<1x256xi32>
    %14 = arith.cmpi sle, %2, %13 : vector<1x256xi32>
    %cst = arith.constant 0.000000e+00 : f32
    %15 = vector.broadcast %cst : f32 to vector<80x256xf32>
    %c0 = arith.constant 0 : index
    %c0_2 = arith.constant 0 : index
    %16 = vector.load %arg6[%c0, %c0_2] : memref<80x256xf32, #tpu.memory_space<vmem>>, vector<80x256xf32>
    tpu.vector_store %arg6[%c0, %c0_2], %15 {strides = array<i32>} : memref<80x256xf32, #tpu.memory_space<vmem>>, vector<80x256xf32>,
    %cst_3 = arith.constant 1.000000e+00 : f32
    %17 = vector.broadcast %cst_3 : f32 to vector<1x256xf32>
    %c0_4 = arith.constant 0 : index
    %c0_5 = arith.constant 0 : index
    %18 = vector.load %arg6[%c0_4, %c0_5] : memref<80x256xf32, #tpu.memory_space<vmem>>, vector<1x256xf32>
    tpu.vector_store %arg6[%c0_4, %c0_5], %17 {strides = array<i32>} : memref<80x256xf32, #tpu.memory_space<vmem>>, vector<1x256xf32>,
    %c0_6 = arith.constant 0 : index
    %c0_7 = arith.constant 0 : index
    %19 = vector.load %arg1[%c0_6, %c0_7] : memref<4x256xf32, #tpu.memory_space<vmem>>, vector<4x256xf32>
    %c0_8 = arith.constant 0 : index
    %c128 = arith.constant 128 : index
    %20 = vector.load %arg5[%c0_8, %c128] : memref<4x512xf32, #tpu.memory_space<vmem>>, vector<4x256xf32>
    tpu.vector_store %arg5[%c0_8, %c128], %19 {strides = array<i32>} : memref<4x512xf32, #tpu.memory_space<vmem>>, vector<4x256xf32>,
    %c0_9 = arith.constant 0 : index
    %c111 = arith.constant 111 : index
    %21 = vector.load %arg5[%c0_9, %c111] : memref<4x512xf32, #tpu.memory_space<vmem>>, vector<4x256xf32>
    %22 = arith.andi %8, %12 : vector<1x256xi1>
    %cst_10 = arith.constant 0.000000e+00 : f32
    %23 = vector.shape_cast %22 : vector<1x256xi1> to vector<1x256xi1>
    %24 = vector.broadcast %23 : vector<1x256xi1> to vector<4x256xi1>
    %25 = vector.broadcast %cst_10 : f32 to vector<4x256xf32>
    %26 = arith.select %24, %21, %25 : vector<4x256xi1>, vector<4x256xf32>
    %c8 = arith.constant 8 : index
    %c0_11 = arith.constant 0 : index
    %27 = vector.load %arg6[%c8, %c0_11] : memref<80x256xf32, #tpu.memory_space<vmem>>, vector<4x256xf32>
    tpu.vector_store %arg6[%c8, %c0_11], %26 {strides = array<i32>} : memref<80x256xf32, #tpu.memory_space<vmem>>, vector<4x256xf32>,
    %c0_12 = arith.constant 0 : index
    %c112 = arith.constant 112 : index
    %28 = vector.load %arg5[%c0_12, %c112] : memref<4x512xf32, #tpu.memory_space<vmem>>, vector<4x256xf32>
    %cst_13 = arith.constant 0.000000e+00 : f32
    %29 = vector.shape_cast %8 : vector<1x256xi1> to vector<1x256xi1>
    %30 = vector.broadcast %29 : vector<1x256xi1> to vector<4x256xi1>
    %31 = vector.broadcast %cst_13 : f32 to vector<4x256xf32>
    %32 = arith.select %30, %28, %31 : vector<4x256xi1>, vector<4x256xf32>
    %c16 = arith.constant 16 : index
    %c0_14 = arith.constant 0 : index
    %33 = vector.load %arg6[%c16, %c0_14] : memref<80x256xf32, #tpu.memory_space<vmem>>, vector<4x256xf32>
    tpu.vector_store %arg6[%c16, %c0_14], %32 {strides = array<i32>} : memref<80x256xf32, #tpu.memory_space<vmem>>, vector<4x256xf32>,
    %c0_15 = arith.constant 0 : index
    %c113 = arith.constant 113 : index
    %34 = vector.load %arg5[%c0_15, %c113] : memref<4x512xf32, #tpu.memory_space<vmem>>, vector<4x256xf32>
    %35 = arith.andi %8, %14 : vector<1x256xi1>
    %cst_16 = arith.constant 0.000000e+00 : f32
    %36 = vector.shape_cast %35 : vector<1x256xi1> to vector<1x256xi1>
    %37 = vector.broadcast %36 : vector<1x256xi1> to vector<4x256xi1>
    %38 = vector.broadcast %cst_16 : f32 to vector<4x256xf32>
    %39 = arith.select %37, %34, %38 : vector<4x256xi1>, vector<4x256xf32>
    %c24 = arith.constant 24 : index
    %c0_17 = arith.constant 0 : index
    %40 = vector.load %arg6[%c24, %c0_17] : memref<80x256xf32, #tpu.memory_space<vmem>>, vector<4x256xf32>
    tpu.vector_store %arg6[%c24, %c0_17], %39 {strides = array<i32>} : memref<80x256xf32, #tpu.memory_space<vmem>>, vector<4x256xf32>,
    %c0_18 = arith.constant 0 : index
    %c127 = arith.constant 127 : index
    %41 = vector.load %arg5[%c0_18, %c127] : memref<4x512xf32, #tpu.memory_space<vmem>>, vector<4x256xf32>
    %cst_19 = arith.constant 0.000000e+00 : f32
    %42 = vector.shape_cast %12 : vector<1x256xi1> to vector<1x256xi1>
    %43 = vector.broadcast %42 : vector<1x256xi1> to vector<4x256xi1>
    %44 = vector.broadcast %cst_19 : f32 to vector<4x256xf32>
    %45 = arith.select %43, %41, %44 : vector<4x256xi1>, vector<4x256xf32>
    %c32 = arith.constant 32 : index
    %c0_20 = arith.constant 0 : index
    %46 = vector.load %arg6[%c32, %c0_20] : memref<80x256xf32, #tpu.memory_space<vmem>>, vector<4x256xf32>
    tpu.vector_store %arg6[%c32, %c0_20], %45 {strides = array<i32>} : memref<80x256xf32, #tpu.memory_space<vmem>>, vector<4x256xf32>,
    %c0_21 = arith.constant 0 : index
    %c128_22 = arith.constant 128 : index
    %47 = vector.load %arg5[%c0_21, %c128_22] : memref<4x512xf32, #tpu.memory_space<vmem>>, vector<4x256xf32>
    %c40 = arith.constant 40 : index
    %c0_23 = arith.constant 0 : index
    %48 = vector.load %arg6[%c40, %c0_23] : memref<80x256xf32, #tpu.memory_space<vmem>>, vector<4x256xf32>
    tpu.vector_store %arg6[%c40, %c0_23], %47 {strides = array<i32>} : memref<80x256xf32, #tpu.memory_space<vmem>>, vector<4x256xf32>,
    %c0_24 = arith.constant 0 : index
    %c129 = arith.constant 129 : index
    %49 = vector.load %arg5[%c0_24, %c129] : memref<4x512xf32, #tpu.memory_space<vmem>>, vector<4x256xf32>
    %cst_25 = arith.constant 0.000000e+00 : f32
    %50 = vector.shape_cast %14 : vector<1x256xi1> to vector<1x256xi1>
    %51 = vector.broadcast %50 : vector<1x256xi1> to vector<4x256xi1>
    %52 = vector.broadcast %cst_25 : f32 to vector<4x256xf32>
    %53 = arith.select %51, %49, %52 : vector<4x256xi1>, vector<4x256xf32>
    %c48 = arith.constant 48 : index
    %c0_26 = arith.constant 0 : index
    %54 = vector.load %arg6[%c48, %c0_26] : memref<80x256xf32, #tpu.memory_space<vmem>>, vector<4x256xf32>
    tpu.vector_store %arg6[%c48, %c0_26], %53 {strides = array<i32>} : memref<80x256xf32, #tpu.memory_space<vmem>>, vector<4x256xf32>,
    %c0_27 = arith.constant 0 : index
    %c143 = arith.constant 143 : index
    %55 = vector.load %arg5[%c0_27, %c143] : memref<4x512xf32, #tpu.memory_space<vmem>>, vector<4x256xf32>
    %56 = arith.andi %10, %12 : vector<1x256xi1>
    %cst_28 = arith.constant 0.000000e+00 : f32
    %57 = vector.shape_cast %56 : vector<1x256xi1> to vector<1x256xi1>
    %58 = vector.broadcast %57 : vector<1x256xi1> to vector<4x256xi1>
    %59 = vector.broadcast %cst_28 : f32 to vector<4x256xf32>
    %60 = arith.select %58, %55, %59 : vector<4x256xi1>, vector<4x256xf32>
    %c56 = arith.constant 56 : index
    %c0_29 = arith.constant 0 : index
    %61 = vector.load %arg6[%c56, %c0_29] : memref<80x256xf32, #tpu.memory_space<vmem>>, vector<4x256xf32>
    tpu.vector_store %arg6[%c56, %c0_29], %60 {strides = array<i32>} : memref<80x256xf32, #tpu.memory_space<vmem>>, vector<4x256xf32>,
    %c0_30 = arith.constant 0 : index
    %c144 = arith.constant 144 : index
    %62 = vector.load %arg5[%c0_30, %c144] : memref<4x512xf32, #tpu.memory_space<vmem>>, vector<4x256xf32>
    %cst_31 = arith.constant 0.000000e+00 : f32
    %63 = vector.shape_cast %10 : vector<1x256xi1> to vector<1x256xi1>
    %64 = vector.broadcast %63 : vector<1x256xi1> to vector<4x256xi1>
    %65 = vector.broadcast %cst_31 : f32 to vector<4x256xf32>
    %66 = arith.select %64, %62, %65 : vector<4x256xi1>, vector<4x256xf32>
    %c64 = arith.constant 64 : index
    %c0_32 = arith.constant 0 : index
    %67 = vector.load %arg6[%c64, %c0_32] : memref<80x256xf32, #tpu.memory_space<vmem>>, vector<4x256xf32>
    tpu.vector_store %arg6[%c64, %c0_32], %66 {strides = array<i32>} : memref<80x256xf32, #tpu.memory_space<vmem>>, vector<4x256xf32>,
    %c0_33 = arith.constant 0 : index
    %c145 = arith.constant 145 : index
    %68 = vector.load %arg5[%c0_33, %c145] : memref<4x512xf32, #tpu.memory_space<vmem>>, vector<4x256xf32>
    %69 = arith.andi %10, %14 : vector<1x256xi1>
    %cst_34 = arith.constant 0.000000e+00 : f32
    %70 = vector.shape_cast %69 : vector<1x256xi1> to vector<1x256xi1>
    %71 = vector.broadcast %70 : vector<1x256xi1> to vector<4x256xi1>
    %72 = vector.broadcast %cst_34 : f32 to vector<4x256xf32>
    %73 = arith.select %71, %68, %72 : vector<4x256xi1>, vector<4x256xf32>
    %c72 = arith.constant 72 : index
    %c0_35 = arith.constant 0 : index
    %74 = vector.load %arg6[%c72, %c0_35] : memref<80x256xf32, #tpu.memory_space<vmem>>, vector<4x256xf32>
    tpu.vector_store %arg6[%c72, %c0_35], %73 {strides = array<i32>} : memref<80x256xf32, #tpu.memory_space<vmem>>, vector<4x256xf32>,
    %c0_36 = arith.constant 0 : index
    %c0_37 = arith.constant 0 : index
    %75 = vector.load %arg2[%c0_36, %c0_37] : memref<2x80xf32, #tpu.memory_space<vmem>>, vector<2x80xf32>
    %c0_38 = arith.constant 0 : index
    %c0_39 = arith.constant 0 : index
    %76 = vector.load %arg6[%c0_38, %c0_39] : memref<80x256xf32, #tpu.memory_space<vmem>>, vector<80x256xf32>
    %cst_40 = arith.constant dense<0.000000e+00> : vector<2x256xf32>
    %77 = tpu.matmul %75, %76, %cst_40 {dimension_numbers = #tpu.dot_dimension_numbers<[1], [0], [0], [1], [0, 0, 1, 1], [], []>} : vector<2x80xf32>, vector<80x256xf32>, vector<2x256xf32> -> vector<2x256xf32>
    %78 = arith.negf %77 : vector<2x256xf32>
    %79 = math.exp %78 : vector<2x256xf32>
    %cst_41 = arith.constant 1.000000e+00 : f32
    %80 = vector.broadcast %cst_41 : f32 to vector<2x256xf32>
    %81 = arith.addf %80, %79 : vector<2x256xf32>
    %82 = arith.divf %80, %81 : vector<2x256xf32>
    %83 = arith.mulf %77, %82 : vector<2x256xf32>
    %c0_42 = arith.constant 0 : index
    %c128_43 = arith.constant 128 : index
    %84 = vector.load %arg5[%c0_42, %c128_43] : memref<4x512xf32, #tpu.memory_space<vmem>>, vector<2x256xf32>
    tpu.vector_store %arg5[%c0_42, %c128_43], %83 {strides = array<i32>} : memref<4x512xf32, #tpu.memory_space<vmem>>, vector<2x256xf32>,
    %c0_44 = arith.constant 0 : index
    %c111_45 = arith.constant 111 : index
    %85 = vector.load %arg5[%c0_44, %c111_45] : memref<4x512xf32, #tpu.memory_space<vmem>>, vector<2x256xf32>
    %86 = arith.andi %8, %12 : vector<1x256xi1>
    %cst_46 = arith.constant 0.000000e+00 : f32
    %87 = vector.shape_cast %86 : vector<1x256xi1> to vector<1x256xi1>
    %88 = vector.broadcast %87 : vector<1x256xi1> to vector<2x256xi1>
    %89 = vector.broadcast %cst_46 : f32 to vector<2x256xf32>
    %90 = arith.select %88, %85, %89 : vector<2x256xi1>, vector<2x256xf32>
    %c8_47 = arith.constant 8 : index
    %c0_48 = arith.constant 0 : index
    %91 = vector.load %arg6[%c8_47, %c0_48] : memref<80x256xf32, #tpu.memory_space<vmem>>, vector<2x256xf32>
    tpu.vector_store %arg6[%c8_47, %c0_48], %90 {strides = array<i32>} : memref<80x256xf32, #tpu.memory_space<vmem>>, vector<2x256xf32>,
    %c0_49 = arith.constant 0 : index
    %c112_50 = arith.constant 112 : index
    %92 = vector.load %arg5[%c0_49, %c112_50] : memref<4x512xf32, #tpu.memory_space<vmem>>, vector<2x256xf32>
    %cst_51 = arith.constant 0.000000e+00 : f32
    %93 = vector.shape_cast %8 : vector<1x256xi1> to vector<1x256xi1>
    %94 = vector.broadcast %93 : vector<1x256xi1> to vector<2x256xi1>
    %95 = vector.broadcast %cst_51 : f32 to vector<2x256xf32>
    %96 = arith.select %94, %92, %95 : vector<2x256xi1>, vector<2x256xf32>
    %c16_52 = arith.constant 16 : index
    %c0_53 = arith.constant 0 : index
    %97 = vector.load %arg6[%c16_52, %c0_53] : memref<80x256xf32, #tpu.memory_space<vmem>>, vector<2x256xf32>
    tpu.vector_store %arg6[%c16_52, %c0_53], %96 {strides = array<i32>} : memref<80x256xf32, #tpu.memory_space<vmem>>, vector<2x256xf32>,
    %c0_54 = arith.constant 0 : index
    %c113_55 = arith.constant 113 : index
    %98 = vector.load %arg5[%c0_54, %c113_55] : memref<4x512xf32, #tpu.memory_space<vmem>>, vector<2x256xf32>
    %99 = arith.andi %8, %14 : vector<1x256xi1>
    %cst_56 = arith.constant 0.000000e+00 : f32
    %100 = vector.shape_cast %99 : vector<1x256xi1> to vector<1x256xi1>
    %101 = vector.broadcast %100 : vector<1x256xi1> to vector<2x256xi1>
    %102 = vector.broadcast %cst_56 : f32 to vector<2x256xf32>
    %103 = arith.select %101, %98, %102 : vector<2x256xi1>, vector<2x256xf32>
    %c24_57 = arith.constant 24 : index
    %c0_58 = arith.constant 0 : index
    %104 = vector.load %arg6[%c24_57, %c0_58] : memref<80x256xf32, #tpu.memory_space<vmem>>, vector<2x256xf32>
    tpu.vector_store %arg6[%c24_57, %c0_58], %103 {strides = array<i32>} : memref<80x256xf32, #tpu.memory_space<vmem>>, vector<2x256xf32>,
    %c0_59 = arith.constant 0 : index
    %c127_60 = arith.constant 127 : index
    %105 = vector.load %arg5[%c0_59, %c127_60] : memref<4x512xf32, #tpu.memory_space<vmem>>, vector<2x256xf32>
    %cst_61 = arith.constant 0.000000e+00 : f32
    %106 = vector.shape_cast %12 : vector<1x256xi1> to vector<1x256xi1>
    %107 = vector.broadcast %106 : vector<1x256xi1> to vector<2x256xi1>
    %108 = vector.broadcast %cst_61 : f32 to vector<2x256xf32>
    %109 = arith.select %107, %105, %108 : vector<2x256xi1>, vector<2x256xf32>
    %c32_62 = arith.constant 32 : index
    %c0_63 = arith.constant 0 : index
    %110 = vector.load %arg6[%c32_62, %c0_63] : memref<80x256xf32, #tpu.memory_space<vmem>>, vector<2x256xf32>
    tpu.vector_store %arg6[%c32_62, %c0_63], %109 {strides = array<i32>} : memref<80x256xf32, #tpu.memory_space<vmem>>, vector<2x256xf32>,
    %c0_64 = arith.constant 0 : index
    %c128_65 = arith.constant 128 : index
    %111 = vector.load %arg5[%c0_64, %c128_65] : memref<4x512xf32, #tpu.memory_space<vmem>>, vector<2x256xf32>
    %c40_66 = arith.constant 40 : index
    %c0_67 = arith.constant 0 : index
    %112 = vector.load %arg6[%c40_66, %c0_67] : memref<80x256xf32, #tpu.memory_space<vmem>>, vector<2x256xf32>
    tpu.vector_store %arg6[%c40_66, %c0_67], %111 {strides = array<i32>} : memref<80x256xf32, #tpu.memory_space<vmem>>, vector<2x256xf32>,
    %c0_68 = arith.constant 0 : index
    %c129_69 = arith.constant 129 : index
    %113 = vector.load %arg5[%c0_68, %c129_69] : memref<4x512xf32, #tpu.memory_space<vmem>>, vector<2x256xf32>
    %cst_70 = arith.constant 0.000000e+00 : f32
    %114 = vector.shape_cast %14 : vector<1x256xi1> to vector<1x256xi1>
    %115 = vector.broadcast %114 : vector<1x256xi1> to vector<2x256xi1>
    %116 = vector.broadcast %cst_70 : f32 to vector<2x256xf32>
    %117 = arith.select %115, %113, %116 : vector<2x256xi1>, vector<2x256xf32>
    %c48_71 = arith.constant 48 : index
    %c0_72 = arith.constant 0 : index
    %118 = vector.load %arg6[%c48_71, %c0_72] : memref<80x256xf32, #tpu.memory_space<vmem>>, vector<2x256xf32>
    tpu.vector_store %arg6[%c48_71, %c0_72], %117 {strides = array<i32>} : memref<80x256xf32, #tpu.memory_space<vmem>>, vector<2x256xf32>,
    %c0_73 = arith.constant 0 : index
    %c143_74 = arith.constant 143 : index
    %119 = vector.load %arg5[%c0_73, %c143_74] : memref<4x512xf32, #tpu.memory_space<vmem>>, vector<2x256xf32>
    %120 = arith.andi %10, %12 : vector<1x256xi1>
    %cst_75 = arith.constant 0.000000e+00 : f32
    %121 = vector.shape_cast %120 : vector<1x256xi1> to vector<1x256xi1>
    %122 = vector.broadcast %121 : vector<1x256xi1> to vector<2x256xi1>
    %123 = vector.broadcast %cst_75 : f32 to vector<2x256xf32>
    %124 = arith.select %122, %119, %123 : vector<2x256xi1>, vector<2x256xf32>
    %c56_76 = arith.constant 56 : index
    %c0_77 = arith.constant 0 : index
    %125 = vector.load %arg6[%c56_76, %c0_77] : memref<80x256xf32, #tpu.memory_space<vmem>>, vector<2x256xf32>
    tpu.vector_store %arg6[%c56_76, %c0_77], %124 {strides = array<i32>} : memref<80x256xf32, #tpu.memory_space<vmem>>, vector<2x256xf32>,
    %c0_78 = arith.constant 0 : index
    %c144_79 = arith.constant 144 : index
    %126 = vector.load %arg5[%c0_78, %c144_79] : memref<4x512xf32, #tpu.memory_space<vmem>>, vector<2x256xf32>
    %cst_80 = arith.constant 0.000000e+00 : f32
    %127 = vector.shape_cast %10 : vector<1x256xi1> to vector<1x256xi1>
    %128 = vector.broadcast %127 : vector<1x256xi1> to vector<2x256xi1>
    %129 = vector.broadcast %cst_80 : f32 to vector<2x256xf32>
    %130 = arith.select %128, %126, %129 : vector<2x256xi1>, vector<2x256xf32>
    %c64_81 = arith.constant 64 : index
    %c0_82 = arith.constant 0 : index
    %131 = vector.load %arg6[%c64_81, %c0_82] : memref<80x256xf32, #tpu.memory_space<vmem>>, vector<2x256xf32>
    tpu.vector_store %arg6[%c64_81, %c0_82], %130 {strides = array<i32>} : memref<80x256xf32, #tpu.memory_space<vmem>>, vector<2x256xf32>,
    %c0_83 = arith.constant 0 : index
    %c145_84 = arith.constant 145 : index
    %132 = vector.load %arg5[%c0_83, %c145_84] : memref<4x512xf32, #tpu.memory_space<vmem>>, vector<2x256xf32>
    %133 = arith.andi %10, %14 : vector<1x256xi1>
    %cst_85 = arith.constant 0.000000e+00 : f32
    %134 = vector.shape_cast %133 : vector<1x256xi1> to vector<1x256xi1>
    %135 = vector.broadcast %134 : vector<1x256xi1> to vector<2x256xi1>
    %136 = vector.broadcast %cst_85 : f32 to vector<2x256xf32>
    %137 = arith.select %135, %132, %136 : vector<2x256xi1>, vector<2x256xf32>
    %c72_86 = arith.constant 72 : index
    %c0_87 = arith.constant 0 : index
    %138 = vector.load %arg6[%c72_86, %c0_87] : memref<80x256xf32, #tpu.memory_space<vmem>>, vector<2x256xf32>
    tpu.vector_store %arg6[%c72_86, %c0_87], %137 {strides = array<i32>} : memref<80x256xf32, #tpu.memory_space<vmem>>, vector<2x256xf32>,
    %c0_88 = arith.constant 0 : index
    %c0_89 = arith.constant 0 : index
    %139 = vector.load %arg3[%c0_88, %c0_89] : memref<4x80xf32, #tpu.memory_space<vmem>>, vector<4x80xf32>
    %c0_90 = arith.constant 0 : index
    %c0_91 = arith.constant 0 : index
    %140 = vector.load %arg6[%c0_90, %c0_91] : memref<80x256xf32, #tpu.memory_space<vmem>>, vector<80x256xf32>
    %cst_92 = arith.constant dense<0.000000e+00> : vector<4x256xf32>
    %141 = tpu.matmul %139, %140, %cst_92 {dimension_numbers = #tpu.dot_dimension_numbers<[1], [0], [0], [1], [0, 0, 1, 1], [], []>} : vector<4x80xf32>, vector<80x256xf32>, vector<4x256xf32> -> vector<4x256xf32>
    %142 = arith.negf %141 : vector<4x256xf32>
    %143 = math.exp %142 : vector<4x256xf32>
    %cst_93 = arith.constant 1.000000e+00 : f32
    %144 = vector.broadcast %cst_93 : f32 to vector<4x256xf32>
    %145 = arith.addf %144, %143 : vector<4x256xf32>
    %146 = arith.divf %144, %145 : vector<4x256xf32>
    %147 = arith.mulf %141, %146 : vector<4x256xf32>
    %148 = arith.addf %147, %19 : vector<4x256xf32>
    %c0_94 = arith.constant 0 : index
    %c0_95 = arith.constant 0 : index
    %149 = vector.load %arg4[%c0_94, %c0_95] : memref<4x256xf32, #tpu.memory_space<vmem>>, vector<4x256xf32>
    tpu.vector_store %arg4[%c0_94, %c0_95], %148 {strides = array<i32>} : memref<4x256xf32, #tpu.memory_space<vmem>>, vector<4x256xf32>,
    return
  }
  func.func @transform_0(%arg0: i32) -> (i32, i32) {
    %c0_i32 = arith.constant 0 : i32
    %c0_i32_0 = arith.constant 0 : i32
    return %c0_i32, %arg0 : i32, i32
  }
  func.func @transform_1(%arg0: i32) -> (i32, i32) {
    %c0_i32 = arith.constant 0 : i32
    %c0_i32_0 = arith.constant 0 : i32
    %c0_i32_1 = arith.constant 0 : i32
    return %c0_i32, %c0_i32_0 : i32, i32
  }
  func.func @transform_2(%arg0: i32) -> (i32, i32) {
    %c0_i32 = arith.constant 0 : i32
    %c0_i32_0 = arith.constant 0 : i32
    %c0_i32_1 = arith.constant 0 : i32
    return %c0_i32, %c0_i32_0 : i32, i32
  }
  func.func @transform_3(%arg0: i32) -> (i32, i32) {
    %c0_i32 = arith.constant 0 : i32
    %c0_i32_0 = arith.constant 0 : i32
    return %c0_i32, %arg0 : i32, i32
  }
}

</mosaic_0001>

<llo_original>
// kernel: tpu_custom_call.1
$region0: #{tpu_custom_call.1}
  #allocation0 [shape = 'u32[]', space=smem, size = 0x4, offset = 0x4, fixed_abs, tag = 'smem constant byte address 0x4 - core index']
  #allocation1 [shape = 'u32[144,128]{1,0:T(1,128)}', space=vmem, size = 0x12000, scoped, tag = 'internal scratch']
  #allocation2 [shape = 'f32[4,512]{1,0:T(4,128)}', space=vmem, size = 0x2000, scoped, tag = 'scratch operand']
  #allocation3 [shape = 'f32[80,256]{1,0:T(8,128)}', space=vmem, size = 0x14000, scoped, tag = 'scratch operand']
  %s0 = inlined_call_operand.hbm [shape: f32[4,512], index: 0, kind: input, shape index: {}]
  %s1 = inlined_call_operand.vmem [shape: f32[2,80], index: 1, kind: input, shape index: {}]
  %s2 = inlined_call_operand.vmem [shape: f32[4,80], index: 2, kind: input, shape index: {}]
  %s3 = inlined_call_operand.hbm [shape: f32[4,512], index: 3, kind: output, shape index: {}]
  %s4 = sld [smem:[#allocation0]]
  $region49: #{tpu_custom_call.1} parent=0
    _
  %s6 = ssub.s32 1, %s4
  %s7 = scalar_select 0, %s6, %s4
  $region1: #{tpu_custom_call.1} parent=0
    #allocation4 [shape = 'u8[8192]{0}', space=vmem, size = 0x2000, scoped, tag = 'input window, operand 0']
    #allocation5 [shape = 's32[2]{0}', space=sflag, size = 0x8, scoped, tag = 'scoped memory for tpu_custom_call.1']
    #allocation6 [shape = 's32[2]{0}', space=sflag, size = 0x8, scoped, tag = 'scoped memory for tpu_custom_call.1']
    #allocation7 [shape = 'u8[8192]{0}', space=vmem, size = 0x2000, scoped, tag = 'output window, operand 0']
    %8 = vsyncpa [#allocation5], 0
    %s9 = scalar_lea.sflag [#allocation5], 1
    %10 = vsyncpa %s9, 0
    %11 = vsyncpa [#allocation6], 0
    %s12 = scalar_lea.sflag [#allocation6], 1
    %13 = vsyncpa %s12, 0
    loop: start=0, step=1, limit=4
    $region2: #{tpu_custom_call.1} parent=1 // loop_pre_header
      _
    $region3: #{tpu_custom_call.1} parent=1 // loop_header
      %s15 = sphi 0, %s19
      %p16 = scmp.ge.s32.totalorder %s15, 4
      %s25 = sphi 0, %s27
      %s28 = sphi 0, %s25
      %s29 = sphi 0, %s28
      %s45 = sphi 0, %s29
      %s49 = sphi 0, %s49
      %s51 = sphi 0, %s49
      %s52 = sphi 0, %s51
      %s66 = sphi 0, %s52
      %s70 = sphi 0, %s70
      %s72 = sphi 0, %s70
      %s73 = sphi 0, %s72
      %s87 = sphi 0, %s73
      %s93 = sphi 0, %s95
      %s96 = sphi 0, %s93
      %s97 = sphi 0, %s96
      %s113 = sphi 0, %s97
    $region4: #{tpu_custom_call.1} parent=1 // loop_header_branch
      %18 = sbr.rel (%p16) target = $region8
    $region5: #{tpu_custom_call.1} parent=1 // loop_body
      %s20 = ssub.s32 %s15, 1
      %s21 = ssub.s32 %s15, 2
      %s22 = sadd.s32 %s15, 1
      %s23 = ssub.s32 %s15, %s22
      %p24 = scmp.eq.s32.totalorder %s23, 0
      %s26 = sadd.s32 %s25, 1
      %s27 = scalar_select %p24, %s25, %s26
      %p30 = pneg %p24
      %p31 = scmp.eq.s32.totalorder %s15, 1
      %p32 = por %p30, %p31
      %p33 = scmp.ne.s32.totalorder %s25, %s28
      %p34 = scmp.eq.s32.totalorder %s15, 0
      %p35 = por %p33, %p34
      %p36 = scmp.ne.s32.totalorder %s25, %s28
      %p37 = scmp.eq.s32.totalorder %s20, 1
      %p38 = por %p36, %p37
      %p39 = scmp.ne.s32.totalorder %s28, %s29
      %p40 = scmp.eq.s32.totalorder %s20, 0
      %p41 = por %p39, %p40
      %p42 = scmp.ne.s32.totalorder %s28, %s29
      %p43 = scmp.eq.s32.totalorder %s21, 1
      %p44 = por %p42, %p43
      %p46 = scmp.ne.s32.totalorder %s29, %s45
      %p47 = scmp.eq.s32.totalorder %s21, 0
      %p48 = por %p46, %p47
      %s50 = sadd.s32 %s49, 1
      %p53 = scmp.eq.s32.totalorder %s15, 1
      %p54 = scmp.ne.s32.totalorder %s49, %s51
      %p55 = scmp.eq.s32.totalorder %s15, 0
      %p56 = por %p54, %p55
      %p57 = scmp.ne.s32.totalorder %s49, %s51
      %p58 = scmp.eq.s32.totalorder %s20, 1
      %p59 = por %p57, %p58
      %p60 = scmp.ne.s32.totalorder %s51, %s52
      %p61 = scmp.eq.s32.totalorder %s20, 0
      %p62 = por %p60, %p61
      %p63 = scmp.ne.s32.totalorder %s51, %s52
      %p64 = scmp.eq.s32.totalorder %s21, 1
      %p65 = por %p63, %p64
      %p67 = scmp.ne.s32.totalorder %s52, %s66
      %p68 = scmp.eq.s32.totalorder %s21, 0
      %p69 = por %p67, %p68
      %s71 = sadd.s32 %s70, 1
      %p74 = scmp.eq.s32.totalorder %s15, 1
      %p75 = scmp.ne.s32.totalorder %s70, %s72
      %p76 = scmp.eq.s32.totalorder %s15, 0
      %p77 = por %p75, %p76
      %p78 = scmp.ne.s32.totalorder %s70, %s72
      %p79 = scmp.eq.s32.totalorder %s20, 1
      %p80 = por %p78, %p79
      %p81 = scmp.ne.s32.totalorder %s72, %s73
      %p82 = scmp.eq.s32.totalorder %s20, 0
      %p83 = por %p81, %p82
      %p84 = scmp.ne.s32.totalorder %s72, %s73
      %p85 = scmp.eq.s32.totalorder %s21, 1
      %p86 = por %p84, %p85
      %p88 = scmp.ne.s32.totalorder %s73, %s87
      %p89 = scmp.eq.s32.totalorder %s21, 0
      %p90 = por %p88, %p89
      %s91 = ssub.s32 %s15, %s22
      %p92 = scmp.eq.s32.totalorder %s91, 0
      %s94 = sadd.s32 %s93, 1
      %s95 = scalar_select %p92, %s93, %s94
      %p98 = pneg %p92
      %p99 = scmp.eq.s32.totalorder %s15, 1
      %p100 = por %p98, %p99
      %p101 = scmp.ne.s32.totalorder %s93, %s96
      %p102 = scmp.eq.s32.totalorder %s15, 0
      %p103 = por %p101, %p102
      %p104 = scmp.ne.s32.totalorder %s93, %s96
      %p105 = scmp.eq.s32.totalorder %s20, 1
      %p106 = por %p104, %p105
      %p107 = scmp.ne.s32.totalorder %s96, %s97
      %p108 = scmp.eq.s32.totalorder %s20, 0
      %p109 = por %p107, %p108
      %p110 = scmp.ne.s32.totalorder %s96, %s97
      %p111 = scmp.eq.s32.totalorder %s21, 1
      %p112 = por %p110, %p111
      %p114 = scmp.ne.s32.totalorder %s97, %s113
      %p115 = scmp.eq.s32.totalorder %s21, 0
      %p116 = por %p114, %p115
      %p117 = scmp.le.s32.totalorder 1, %s15
      %p118 = scmp.lt.s32.totalorder %s15, 3
      %p119 = pnand %p117, %p118
      %p120 = pneg %p119
      // Predicated region
      $region9: #{tpu_custom_call.1} parent=5 // pred_check
        _
      $region10: #{tpu_custom_call.1} parent=5 // pred_check_branch
        %122 = sbr.rel (%p119) target = $region12
      $region11: #{tpu_custom_call.1} parent=5 // pred_region
        %s123 = ssub.s32 %s15, 1
        // Predicated region
        $region13: #{tpu_custom_call.1} parent=11 // pred_check
          %p124 = pneg %p62
        $region14: #{tpu_custom_call.1} parent=11 // pred_check_branch
          %126 = sbr.rel (%p124) target = $region16
        $region15: #{tpu_custom_call.1} parent=11 // pred_region
          _
        $region16: #{tpu_custom_call.1} parent=11 // pred_fallthru
          _
        // Predicated region
        $region17: #{tpu_custom_call.1} parent=11 // pred_check
          %p127 = pneg %p83
        $region18: #{tpu_custom_call.1} parent=11 // pred_check_branch
          %129 = sbr.rel (%p127) target = $region20
        $region19: #{tpu_custom_call.1} parent=11 // pred_region
          _
        $region20: #{tpu_custom_call.1} parent=11 // pred_fallthru
          _
      $region12: #{tpu_custom_call.1} parent=5 // pred_fallthru
        _
      %p130 = scmp.lt.s32.totalorder %s15, 2
      // Predicated region
      $region21: #{tpu_custom_call.1} parent=5 // pred_check
        %p131 = pneg %p130
      $region22: #{tpu_custom_call.1} parent=5 // pred_check_branch
        %133 = sbr.rel (%p131) target = $region24
      $region23: #{tpu_custom_call.1} parent=5 // pred_region
        // Predicated region
        $region25: #{tpu_custom_call.1} parent=23 // pred_check
          %p134 = pneg %p35
        $region26: #{tpu_custom_call.1} parent=23 // pred_check_branch
          %136 = sbr.rel (%p134) target = $region28
        $region27: #{tpu_custom_call.1} parent=23 // pred_region
          %s137 = sand.u32 %s25, 1
          %s138 = scalar_lea.sflag [#allocation5], %s137
          %s139 = sand.u32 %s25, 1
          %s140 = smul.addr %s139, 8
          %s141 = scalar_lea.vmem [#allocation4], %s140
          %s142 = smul.u32 2, %s15
          %s144 = ssub.s32 128, 128
          %145 = vsyncadd %s138, %s144
          %s146 = smul.addr %s142, 64
          %s147 = scalar_lea.hbm %s0, %s146
          %s149 = sshll.u32 %s141, 4
          %s150 = int_to_ptr.vmem [resolvable:$true] %s149
          %152 = dma.hbm_to_vmem [thread:$0]  %s147, 128, %s150, %s138
        $region28: #{tpu_custom_call.1} parent=23 // pred_fallthru
          _
      $region24: #{tpu_custom_call.1} parent=5 // pred_fallthru
        _
      %p153 = scmp.le.s32.totalorder 1, %s15
      %p154 = scmp.lt.s32.totalorder %s15, 3
      %p155 = pnand %p153, %p154
      %p156 = pneg %p155
      // Predicated region
      $region29: #{tpu_custom_call.1} parent=5 // pred_check
        _
      $region30: #{tpu_custom_call.1} parent=5 // pred_check_branch
        %158 = sbr.rel (%p155) target = $region32
      $region31: #{tpu_custom_call.1} parent=5 // pred_region
        %s159 = ssub.s32 %s15, 1
        %s160 = sand.u32 %s28, 1
        %s161 = scalar_lea.sflag [#allocation5], %s160
        %s162 = sand.u32 %s28, 1
        %s163 = smul.addr %s162, 8
        %s164 = scalar_lea.vmem [#allocation4], %s163
        // Predicated region
        $region33: #{tpu_custom_call.1} parent=31 // pred_check
          %p165 = pneg %p41
        $region34: #{tpu_custom_call.1} parent=31 // pred_check_branch
          %167 = sbr.rel (%p165) target = $region36
        $region35: #{tpu_custom_call.1} parent=31 // pred_region
          %168 = dma.done %s161, 128
        $region36: #{tpu_custom_call.1} parent=31 // pred_fallthru
          _
        %s169 = sand.u32 %s28, 1
        %s170 = scalar_lea.sflag [#allocation5], %s169
        %s171 = sand.u32 %s28, 1
        %s172 = smul.addr %s171, 8
        %s173 = scalar_lea.vmem [#allocation4], %s172
        %p174 = pneg %p41
        %p175 = pneg %p38
        %p176 = pneg %p62
        %p177 = pneg %p59
        %p178 = pneg %p83
        %p179 = pneg %p80
        %p180 = pneg %p109
        %p181 = pneg %p106
        %s182 = sand.u32 %s96, 1
        %s183 = scalar_lea.sflag [#allocation6], %s182
        %s184 = sand.u32 %s96, 1
        %s185 = smul.addr %s184, 8
        %s186 = scalar_lea.vmem [#allocation7], %s185
        %s187 = smul.u32 2, %s20
        %s188 = smul.u32 2, %s20
        %v189 = vlaneseq
        %v190 = vand.u32 %v189, 127
        %v191 = vadd.s32 %v190, 128
        %v192 = vand.u32 %v190, 15
        %v193 = vand.u32 %v191, 15
        %v194 = vand.u32 %v190, 255
        %v195 = vand.u32 %v191, 255
        %v196 = vshra.s32 %v194, 4
        %v197 = vshra.s32 %v195, 4
        %vm198 = vcmp.ge.s32.totalorder %v196, 1
        %vm199 = vcmp.ge.s32.totalorder %v197, 1
        %vm200 = vcmp.le.s32.totalorder %v196, 14
        %vm201 = vcmp.le.s32.totalorder %v197, 14
        %vm202 = vcmp.ge.s32.totalorder %v192, 1
        %vm203 = vcmp.ge.s32.totalorder %v193, 1
        %vm204 = vcmp.le.s32.totalorder %v192, 14
        %vm205 = vcmp.le.s32.totalorder %v193, 14
        %206 = vst [vmem:[#allocation3] sm:$0xff] 0.0
        %207 = vst [vmem:[#allocation3 + $0x8] sm:$0xff] 0.0
        %208 = vst [vmem:[#allocation3 + $0x10] sm:$0xff] 0.0
        %209 = vst [vmem:[#allocation3 + $0x18] sm:$0xff] 0.0
        %210 = vst [vmem:[#allocation3 + $0x20] sm:$0xff] 0.0
        %211 = vst [vmem:[#allocation3 + $0x28] sm:$0xff] 0.0
        %212 = vst [vmem:[#allocation3 + $0x30] sm:$0xff] 0.0
        %213 = vst [vmem:[#allocation3 + $0x38] sm:$0xff] 0.0
        %214 = vst [vmem:[#allocation3 + $0x40] sm:$0xff] 0.0
        %215 = vst [vmem:[#allocation3 + $0x48] sm:$0xff] 0.0
        %216 = vst [vmem:[#allocation3 + $0x50] sm:$0xff] 0.0
        %217 = vst [vmem:[#allocation3 + $0x58] sm:$0xff] 0.0
        %218 = vst [vmem:[#allocation3 + $0x60] sm:$0xff] 0.0
        %219 = vst [vmem:[#allocation3 + $0x68] sm:$0xff] 0.0
        %220 = vst [vmem:[#allocation3 + $0x70] sm:$0xff] 0.0
        %221 = vst [vmem:[#allocation3 + $0x78] sm:$0xff] 0.0
        %222 = vst [vmem:[#allocation3 + $0x80] sm:$0xff] 0.0
        %223 = vst [vmem:[#allocation3 + $0x88] sm:$0xff] 0.0
        %224 = vst [vmem:[#allocation3 + $0x90] sm:$0xff] 0.0
        %225 = vst [vmem:[#allocation3 + $0x98] sm:$0xff] 0.0
        %v226 = vlaneseq
        %vm227 = vcmp.ge.s32.totalorder %v226, 0
        %vm228 = vcmp.lt.s32.totalorder %v226, 256
        %vm229 = vmand %vm227, %vm228
        %230 = vst.msk [vmem:[#allocation3] ss:$8 sm:$0x3] %vm229, 1.0
        %231 = vst.msk [vmem:[#allocation3] ss:$8 sm:$0x0] %vm229, 1.0
        %v232 = vld [vmem:[%s164] sm:$0xff]
        %233 = vst [vmem:[#allocation2 + $0x4] sm:$0xff] %v232
        %v234 = vld [vmem:[#allocation2] sm:$0xff]
        %v235 = vld [vmem:[#allocation2 + $0x8] sm:$0xf]
        %vm236 = vmand %vm198, %vm202
        %vm237 = vmand %vm199, %vm203
        %v238 = vsel %vm236, 1, 0
        %v239 = vsel %vm237, 1, 0
        %vm240 = vcmp.eq.s32.totalorder %v238, 1
        %vm241 = vcmp.eq.s32.totalorder %v239, 1
        %v244 = vcombine.high %v234, %v234
        %245 = vrot.lane.b32.xlu0 %v234, 17
        %v246 = vpop.permute.xlu0 %245
        %247 = vrot.lane.b32.xlu0 %v244, 17
        %v248 = vpop.permute.xlu0 %247
        %249 = vrot.lane.b32.xlu0 %v235, 17
        %v250 = vpop.permute.xlu0 %249
        %vm251 = vcmask 138240
        %v252 = vsel %vm251, %v246, %v248
        %v253 = vsel %vm251, %v248, %v250
        %v256 = vsel %vm240, %v252, 0.0
        %v257 = vsel %vm241, %v253, 0.0
        %258 = vst [vmem:[#allocation3 + $0x10] sm:$0xf] %v256
        %259 = vst [vmem:[#allocation3 + $0x18] sm:$0xf] %v257
        %v260 = vld [vmem:[#allocation2] sm:$0xff]
        %v261 = vld [vmem:[#allocation2 + $0x8] sm:$0xf]
        %v262 = vsel %vm198, 1, 0
        %v263 = vsel %vm199, 1, 0
        %vm264 = vcmp.eq.s32.totalorder %v262, 1
        %vm265 = vcmp.eq.s32.totalorder %v263, 1
        %v268 = vcombine.high %v260, %v260
        %269 = vrot.lane.b32.xlu0 %v260, 16
        %v270 = vpop.permute.xlu0 %269
        %271 = vrot.lane.b32.xlu0 %v268, 16
        %v272 = vpop.permute.xlu0 %271
        %273 = vrot.lane.b32.xlu0 %v261, 16
        %v274 = vpop.permute.xlu0 %273
        %vm275 = vcmask 130048
        %v276 = vsel %vm275, %v270, %v272
        %v277 = vsel %vm275, %v272, %v274
        %v280 = vsel %vm264, %v276, 0.0
        %v281 = vsel %vm265, %v277, 0.0
        %282 = vst [vmem:[#allocation3 + $0x20] sm:$0xf] %v280
        %283 = vst [vmem:[#allocation3 + $0x28] sm:$0xf] %v281
        %v284 = vld [vmem:[#allocation2] sm:$0xff]
        %v285 = vld [vmem:[#allocation2 + $0x8] sm:$0xf]
        %vm286 = vmand %vm198, %vm204
        %vm287 = vmand %vm199, %vm205
        %v288 = vsel %vm286, 1, 0
        %v289 = vsel %vm287, 1, 0
        %vm290 = vcmp.eq.s32.totalorder %v288, 1
        %vm291 = vcmp.eq.s32.totalorder %v289, 1
        %v294 = vcombine.high %v284, %v284
        %295 = vrot.lane.b32.xlu0 %v284, 15
        %v296 = vpop.permute.xlu0 %295
        %297 = vrot.lane.b32.xlu0 %v294, 15
        %v298 = vpop.permute.xlu0 %297
        %299 = vrot.lane.b32.xlu0 %v285, 15
        %v300 = vpop.permute.xlu0 %299
        %vm301 = vcmask 121856
        %v302 = vsel %vm301, %v296, %v298
        %v303 = vsel %vm301, %v298, %v300
        %v306 = vsel %vm290, %v302, 0.0
        %v307 = vsel %vm291, %v303, 0.0
        %308 = vst [vmem:[#allocation3 + $0x30] sm:$0xf] %v306
        %309 = vst [vmem:[#allocation3 + $0x38] sm:$0xf] %v307
        %v310 = vld [vmem:[#allocation2] sm:$0xff]
        %v311 = vld [vmem:[#allocation2 + $0x8] sm:$0xf]
        %v312 = vsel %vm202, 1, 0
        %v313 = vsel %vm203, 1, 0
        %vm314 = vcmp.eq.s32.totalorder %v312, 1
        %vm315 = vcmp.eq.s32.totalorder %v313, 1
        %v318 = vcombine.high %v310, %v310
        %319 = vrot.lane.b32.xlu0 %v310, 1
        %v320 = vpop.permute.xlu0 %319
        %321 = vrot.lane.b32.xlu0 %v318, 1
        %v322 = vpop.permute.xlu0 %321
        %323 = vrot.lane.b32.xlu0 %v311, 1
        %v324 = vpop.permute.xlu0 %323
        %vm325 = vcmask 7168
        %v326 = vsel %vm325, %v320, %v322
        %v327 = vsel %vm325, %v322, %v324
        %v330 = vsel %vm314, %v326, 0.0
        %v331 = vsel %vm315, %v327, 0.0
        %332 = vst [vmem:[#allocation3 + $0x40] sm:$0xf] %v330
        %333 = vst [vmem:[#allocation3 + $0x48] sm:$0xf] %v331
        %v334 = vld [vmem:[#allocation2 + $0x4] sm:$0xff]
        %v336 = vcombine.high %v334, %v334
        %338 = vst [vmem:[#allocation3 + $0x50] sm:$0xf] %v334
        %339 = vst [vmem:[#allocation3 + $0x58] sm:$0xf] %v336
        %v340 = vld [vmem:[#allocation2 + $0x4] sm:$0xff]
        %v341 = vld [vmem:[#allocation2 + $0xc] sm:$0xf]
        %v342 = vsel %vm204, 1, 0
        %v343 = vsel %vm205, 1, 0
        %vm344 = vcmp.eq.s32.totalorder %v342, 1
        %vm345 = vcmp.eq.s32.totalorder %v343, 1
        %v348 = vcombine.high %v340, %v340
        %349 = vrot.lane.b32.xlu0 %v340, 127
        %v350 = vpop.permute.xlu0 %349
        %351 = vrot.lane.b32.xlu0 %v348, 127
        %v352 = vpop.permute.xlu0 %351
        %353 = vrot.lane.b32.xlu0 %v341, 127
        %v354 = vpop.permute.xlu0 %353
        %vm355 = vcmask 1039360
        %v356 = vsel %vm355, %v350, %v352
        %v357 = vsel %vm355, %v352, %v354
        %v360 = vsel %vm344, %v356, 0.0
        %v361 = vsel %vm345, %v357, 0.0
        %362 = vst [vmem:[#allocation3 + $0x60] sm:$0xf] %v360
        %363 = vst [vmem:[#allocation3 + $0x68] sm:$0xf] %v361
        %v364 = vld [vmem:[#allocation2 + $0x4] sm:$0xff]
        %v365 = vld [vmem:[#allocation2 + $0xc] sm:$0xf]
        %vm366 = vmand %vm200, %vm202
        %vm367 = vmand %vm201, %vm203
        %v368 = vsel %vm366, 1, 0
        %v369 = vsel %vm367, 1, 0
        %vm370 = vcmp.eq.s32.totalorder %v368, 1
        %vm371 = vcmp.eq.s32.totalorder %v369, 1
        %v374 = vcombine.high %v364, %v364
        %375 = vrot.lane.b32.xlu0 %v364, 113
        %v376 = vpop.permute.xlu0 %375
        %377 = vrot.lane.b32.xlu0 %v374, 113
        %v378 = vpop.permute.xlu0 %377
        %379 = vrot.lane.b32.xlu0 %v365, 113
        %v380 = vpop.permute.xlu0 %379
        %vm381 = vcmask 924672
        %v382 = vsel %vm381, %v376, %v378
        %v383 = vsel %vm381, %v378, %v380
        %v386 = vsel %vm370, %v382, 0.0
        %v387 = vsel %vm371, %v383, 0.0
        %388 = vst [vmem:[#allocation3 + $0x70] sm:$0xf] %v386
        %389 = vst [vmem:[#allocation3 + $0x78] sm:$0xf] %v387
        %v390 = vld [vmem:[#allocation2 + $0x4] sm:$0xff]
        %v391 = vld [vmem:[#allocation2 + $0xc] sm:$0xf]
        %v392 = vsel %vm200, 1, 0
        %v393 = vsel %vm201, 1, 0
        %vm394 = vcmp.eq.s32.totalorder %v392, 1
        %vm395 = vcmp.eq.s32.totalorder %v393, 1
        %v398 = vcombine.high %v390, %v390
        %399 = vrot.lane.b32.xlu0 %v390, 112
        %v400 = vpop.permute.xlu0 %399
        %401 = vrot.lane.b32.xlu0 %v398, 112
        %v402 = vpop.permute.xlu0 %401
        %403 = vrot.lane.b32.xlu0 %v391, 112
        %v404 = vpop.permute.xlu0 %403
        %vm405 = vcmask 916480
        %v406 = vsel %vm405, %v400, %v402
        %v407 = vsel %vm405, %v402, %v404
        %v410 = vsel %vm394, %v406, 0.0
        %v411 = vsel %vm395, %v407, 0.0
        %412 = vst [vmem:[#allocation3 + $0x80] sm:$0xf] %v410
        %413 = vst [vmem:[#allocation3 + $0x88] sm:$0xf] %v411
        %v414 = vld [vmem:[#allocation2 + $0x4] sm:$0xff]
        %v415 = vld [vmem:[#allocation2 + $0xc] sm:$0xf]
        %vm416 = vmand %vm200, %vm204
        %vm417 = vmand %vm201, %vm205
        %v418 = vsel %vm416, 1, 0
        %v419 = vsel %vm417, 1, 0
        %vm420 = vcmp.eq.s32.totalorder %v418, 1
        %vm421 = vcmp.eq.s32.totalorder %v419, 1
        %v424 = vcombine.high %v414, %v414
        %425 = vrot.lane.b32.xlu0 %v414, 111
        %v426 = vpop.permute.xlu0 %425
        %427 = vrot.lane.b32.xlu0 %v424, 111
        %v428 = vpop.permute.xlu0 %427
        %429 = vrot.lane.b32.xlu0 %v415, 111
        %v430 = vpop.permute.xlu0 %429
        %vm431 = vcmask 908288
        %v432 = vsel %vm431, %v426, %v428
        %v433 = vsel %vm431, %v428, %v430
        %v436 = vsel %vm420, %v432, 0.0
        %v437 = vsel %vm421, %v433, 0.0
        %438 = vst [vmem:[#allocation3 + $0x90] sm:$0xf] %v436
        %439 = vst [vmem:[#allocation3 + $0x98] sm:$0xf] %v437
        %v440 = vld [vmem:[%s1] sm:$0x3]
        %v441 = vld [vmem:[#allocation3] sm:$0xff]
        %v442 = vld [vmem:[#allocation3 + $0x8] sm:$0xff]
        %v443 = vld [vmem:[#allocation3 + $0x10] sm:$0xff]
        %v444 = vld [vmem:[#allocation3 + $0x18] sm:$0xff]
        %v445 = vld [vmem:[#allocation3 + $0x20] sm:$0xff]
        %v446 = vld [vmem:[#allocation3 + $0x28] sm:$0xff]
        %v447 = vld [vmem:[#allocation3 + $0x30] sm:$0xff]
        %v448 = vld [vmem:[#allocation3 + $0x38] sm:$0xff]
        %v449 = vld [vmem:[#allocation3 + $0x40] sm:$0xff]
        %v450 = vld [vmem:[#allocation3 + $0x48] sm:$0xff]
        %v451 = vld [vmem:[#allocation3 + $0x50] sm:$0xff]
        %v452 = vld [vmem:[#allocation3 + $0x58] sm:$0xff]
        %v453 = vld [vmem:[#allocation3 + $0x60] sm:$0xff]
        %v454 = vld [vmem:[#allocation3 + $0x68] sm:$0xff]
        %v455 = vld [vmem:[#allocation3 + $0x70] sm:$0xff]
        %v456 = vld [vmem:[#allocation3 + $0x78] sm:$0xff]
        %v457 = vld [vmem:[#allocation3 + $0x80] sm:$0xff]
        %v458 = vld [vmem:[#allocation3 + $0x88] sm:$0xff]
        %v459 = vld [vmem:[#allocation3 + $0x90] sm:$0xff]
        %v460 = vld [vmem:[#allocation3 + $0x98] sm:$0xff]
        %vm461 = vcmask 654336
        %v463 = vsel %vm461, %v440, 0
        %465 = vmatprep.subr.mxu0 %v442
        %466 = vmatpush1.msra.mxu0 %v441
        %467 = vmatprep.subr.mxu0 %v444
        %468 = vmatpush1.msra.mxu0 %v443
        %469 = vmatprep.subr.mxu0 %v446
        %470 = vmatpush1.msra.mxu0 %v445
        %471 = vmatprep.subr.mxu0 %v448
        %472 = vmatpush1.msra.mxu0 %v447
        %473 = vmatprep.subr.mxu0 %v450
        %474 = vmatpush1.msra.mxu0 %v449
        %475 = vmatprep.subr.mxu0 %v452
        %476 = vmatpush1.msra.mxu0 %v451
        %477 = vmatprep.subr.mxu0 %v454
        %478 = vmatpush1.msra.mxu0 %v453
        %479 = vmatprep.subr.mxu0 %v456
        %480 = vmatpush1.msra.mxu0 %v455
        %481 = vmatprep.subr.mxu0 %v458
        %482 = vmatpush1.msra.mxu0 %v457
        %483 = vmatprep.subr.mxu0 %v460
        %484 = vmatpush1.msra.mxu0 %v459
        %485 = vmatprep.subr.mxu0 0.0
        %486 = vmatpush1.msra.mxu0 0.0
        %487 = vmatprep.subr.mxu0 0.0
        %488 = vmatpush1.msra.mxu0 0.0
        %489 = vmatprep.subr.mxu0 0.0
        %490 = vmatpush1.msra.mxu0 0.0
        %491 = vmatprep.subr.mxu0 0.0
        %492 = vmatpush1.msra.mxu0 0.0
        %493 = vmatprep.subr.mxu0 0.0
        %494 = vmatpush1.msra.mxu0 0.0
        %495 = vmatprep.subr.mxu0 0.0
        %496 = vmatpush1.msra.mxu0 0.0
        %497 = vmatprep.subr.mxu0 0.0
        %498 = vmatpush1.msra.mxu0 0.0
        %499 = vmatprep.subr.mxu0 0.0
        %500 = vmatpush1.msra.mxu0 0.0
        %501 = vmatprep.subr.mxu0 0.0
        %502 = vmatpush1.msra.mxu0 0.0
        %503 = vmatprep.subr.mxu0 0.0
        %504 = vmatpush1.msra.mxu0 0.0
        %505 = vmatprep.subr.mxu0 0.0
        %506 = vmatpush1.msra.mxu0 0.0
        %507 = vmatprep.subr.mxu0 0.0
        %508 = vmatpush1.msra.mxu0 0.0
        %509 = vmatprep.subr.mxu0 0.0
        %510 = vmatpush1.msra.mxu0 0.0
        %511 = vmatprep.subr.mxu0 0.0
        %512 = vmatpush1.msra.mxu0 0.0
        %513 = vmatprep.subr.mxu0 0.0
        %514 = vmatpush1.msra.mxu0 0.0
        %515 = vmatprep.subr.mxu0 0.0
        %516 = vmatpush1.msra.mxu0 0.0
        %517 = vmatprep.subr.mxu0 0.0
        %518 = vmatpush1.msra.mxu0 0.0
        %519 = vmatprep.subr.mxu0 0.0
        %520 = vmatpush1.msra.mxu0 0.0
        %521 = vmatprep.subr.mxu0 0.0
        %522 = vmatpush1.msra.mxu0 0.0
        %523 = vmatprep.subr.mxu0 0.0
        %524 = vmatpush1.msra.mxu0 0.0
        %525 = vmatprep.subr.mxu0 0.0
        %526 = vmatpush1.msra.mxu0 0.0
        %527 = vmatprep.subr.mxu0 0.0
        %528 = vmatpush1.msra.mxu0 0.0
        %529 = vmatprep.mubr.f32.mxu0 0.0
        %530 = vmatmul.mubr.f32.gmra.mrb[0].mxu0 %v463
        %v531 = vpop.f32.mrb[0].mxu0
        %v532 = vadd.f32 0.0, %v531
        %v533 = vpop.f32.mrb[0].mxu0
        %v534 = vadd.f32 0.0, %v533
        %535 = vdwg.mxu0
        %v536 = vxor.u32 %v532, 2147483648
        %v537 = vxor.u32 %v534, 2147483648
        %v538 = vmul.f32 %v536, 1.442695
        %v539 = vpow.pop %v538
        %v540 = vmul.f32 %v537, 1.442695
        %v541 = vpow.pop %v540
        %v542 = vadd.f32 %v539, 1.0
        %v543 = vadd.f32 %v541, 1.0
        %v544 = vrcp.pop %v542
        %v545 = vmul.f32 1.0, %v544
        %v546 = vrcp.pop %v543
        %v547 = vmul.f32 1.0, %v546
        %v548 = vmul.f32 %v532, %v545
        %v549 = vmul.f32 %v534, %v547
        %v552 = vcombine.low %v548, %v549
        %554 = vst [vmem:[#allocation2 + $0x4] sm:$0x33] %v552
        %v555 = vld [vmem:[#allocation2] sm:$0x33]
        %v556 = vld [vmem:[#allocation2 + $0x8] sm:$0x3]
        %v559 = vcombine.high %v555, %v555
        %560 = vrot.lane.b32.xlu0 %v555, 17
        %v561 = vpop.permute.xlu0 %560
        %562 = vrot.lane.b32.xlu0 %v559, 17
        %v563 = vpop.permute.xlu0 %562
        %564 = vrot.lane.b32.xlu0 %v556, 17
        %v565 = vpop.permute.xlu0 %564
        %v566 = vsel %vm251, %v561, %v563
        %v567 = vsel %vm251, %v563, %v565
        %v570 = vsel %vm240, %v566, 0.0
        %v571 = vsel %vm241, %v567, 0.0
        %572 = vst [vmem:[#allocation3 + $0x10] sm:$0x3] %v570
        %573 = vst [vmem:[#allocation3 + $0x18] sm:$0x3] %v571
        %v574 = vld [vmem:[#allocation2] sm:$0x33]
        %v575 = vld [vmem:[#allocation2 + $0x8] sm:$0x3]
        %v578 = vcombine.high %v574, %v574
        %579 = vrot.lane.b32.xlu0 %v574, 16
        %v580 = vpop.permute.xlu0 %579
        %581 = vrot.lane.b32.xlu0 %v578, 16
        %v582 = vpop.permute.xlu0 %581
        %583 = vrot.lane.b32.xlu0 %v575, 16
        %v584 = vpop.permute.xlu0 %583
        %v585 = vsel %vm275, %v580, %v582
        %v586 = vsel %vm275, %v582, %v584
        %v589 = vsel %vm264, %v585, 0.0
        %v590 = vsel %vm265, %v586, 0.0
        %591 = vst [vmem:[#allocation3 + $0x20] sm:$0x3] %v589
        %592 = vst [vmem:[#allocation3 + $0x28] sm:$0x3] %v590
        %v593 = vld [vmem:[#allocation2] sm:$0x33]
        %v594 = vld [vmem:[#allocation2 + $0x8] sm:$0x3]
        %v597 = vcombine.high %v593, %v593
        %598 = vrot.lane.b32.xlu0 %v593, 15
        %v599 = vpop.permute.xlu0 %598
        %600 = vrot.lane.b32.xlu0 %v597, 15
        %v601 = vpop.permute.xlu0 %600
        %602 = vrot.lane.b32.xlu0 %v594, 15
        %v603 = vpop.permute.xlu0 %602
        %v604 = vsel %vm301, %v599, %v601
        %v605 = vsel %vm301, %v601, %v603
        %v608 = vsel %vm290, %v604, 0.0
        %v609 = vsel %vm291, %v605, 0.0
        %610 = vst [vmem:[#allocation3 + $0x30] sm:$0x3] %v608
        %611 = vst [vmem:[#allocation3 + $0x38] sm:$0x3] %v609
        %v612 = vld [vmem:[#allocation2] sm:$0x33]
        %v613 = vld [vmem:[#allocation2 + $0x8] sm:$0x3]
        %v616 = vcombine.high %v612, %v612
        %617 = vrot.lane.b32.xlu0 %v612, 1
        %v618 = vpop.permute.xlu0 %617
        %619 = vrot.lane.b32.xlu0 %v616, 1
        %v620 = vpop.permute.xlu0 %619
        %621 = vrot.lane.b32.xlu0 %v613, 1
        %v622 = vpop.permute.xlu0 %621
        %v623 = vsel %vm325, %v618, %v620
        %v624 = vsel %vm325, %v620, %v622
        %v627 = vsel %vm314, %v623, 0.0
        %v628 = vsel %vm315, %v624, 0.0
        %629 = vst [vmem:[#allocation3 + $0x40] sm:$0x3] %v627
        %630 = vst [vmem:[#allocation3 + $0x48] sm:$0x3] %v628
        %v631 = vld [vmem:[#allocation2 + $0x4] sm:$0x33]
        %v633 = vcombine.high %v631, %v631
        %635 = vst [vmem:[#allocation3 + $0x50] sm:$0x3] %v631
        %636 = vst [vmem:[#allocation3 + $0x58] sm:$0x3] %v633
        %v637 = vld [vmem:[#allocation2 + $0x4] sm:$0x33]
        %v638 = vld [vmem:[#allocation2 + $0xc] sm:$0x3]
        %v641 = vcombine.high %v637, %v637
        %642 = vrot.lane.b32.xlu0 %v637, 127
        %v643 = vpop.permute.xlu0 %642
        %644 = vrot.lane.b32.xlu0 %v641, 127
        %v645 = vpop.permute.xlu0 %644
        %646 = vrot.lane.b32.xlu0 %v638, 127
        %v647 = vpop.permute.xlu0 %646
        %v648 = vsel %vm355, %v643, %v645
        %v649 = vsel %vm355, %v645, %v647
        %v652 = vsel %vm344, %v648, 0.0
        %v653 = vsel %vm345, %v649, 0.0
        %654 = vst [vmem:[#allocation3 + $0x60] sm:$0x3] %v652
        %655 = vst [vmem:[#allocation3 + $0x68] sm:$0x3] %v653
        %v656 = vld [vmem:[#allocation2 + $0x4] sm:$0x33]
        %v657 = vld [vmem:[#allocation2 + $0xc] sm:$0x3]
        %v660 = vcombine.high %v656, %v656
        %661 = vrot.lane.b32.xlu0 %v656, 113
        %v662 = vpop.permute.xlu0 %661
        %663 = vrot.lane.b32.xlu0 %v660, 113
        %v664 = vpop.permute.xlu0 %663
        %665 = vrot.lane.b32.xlu0 %v657, 113
        %v666 = vpop.permute.xlu0 %665
        %v667 = vsel %vm381, %v662, %v664
        %v668 = vsel %vm381, %v664, %v666
        %v671 = vsel %vm370, %v667, 0.0
        %v672 = vsel %vm371, %v668, 0.0
        %673 = vst [vmem:[#allocation3 + $0x70] sm:$0x3] %v671
        %674 = vst [vmem:[#allocation3 + $0x78] sm:$0x3] %v672
        %v675 = vld [vmem:[#allocation2 + $0x4] sm:$0x33]
        %v676 = vld [vmem:[#allocation2 + $0xc] sm:$0x3]
        %v679 = vcombine.high %v675, %v675
        %680 = vrot.lane.b32.xlu0 %v675, 112
        %v681 = vpop.permute.xlu0 %680
        %682 = vrot.lane.b32.xlu0 %v679, 112
        %v683 = vpop.permute.xlu0 %682
        %684 = vrot.lane.b32.xlu0 %v676, 112
        %v685 = vpop.permute.xlu0 %684
        %v686 = vsel %vm405, %v681, %v683
        %v687 = vsel %vm405, %v683, %v685
        %v690 = vsel %vm394, %v686, 0.0
        %v691 = vsel %vm395, %v687, 0.0
        %692 = vst [vmem:[#allocation3 + $0x80] sm:$0x3] %v690
        %693 = vst [vmem:[#allocation3 + $0x88] sm:$0x3] %v691
        %v694 = vld [vmem:[#allocation2 + $0x4] sm:$0x33]
        %v695 = vld [vmem:[#allocation2 + $0xc] sm:$0x3]
        %v698 = vcombine.high %v694, %v694
        %699 = vrot.lane.b32.xlu0 %v694, 111
        %v700 = vpop.permute.xlu0 %699
        %701 = vrot.lane.b32.xlu0 %v698, 111
        %v702 = vpop.permute.xlu0 %701
        %703 = vrot.lane.b32.xlu0 %v695, 111
        %v704 = vpop.permute.xlu0 %703
        %v705 = vsel %vm431, %v700, %v702
        %v706 = vsel %vm431, %v702, %v704
        %v709 = vsel %vm420, %v705, 0.0
        %v710 = vsel %vm421, %v706, 0.0
        %711 = vst [vmem:[#allocation3 + $0x90] sm:$0x3] %v709
        %712 = vst [vmem:[#allocation3 + $0x98] sm:$0x3] %v710
        %v713 = vld [vmem:[%s2] sm:$0xf]
        %v714 = vld [vmem:[#allocation3] sm:$0xff]
        %v715 = vld [vmem:[#allocation3 + $0x8] sm:$0xff]
        %v716 = vld [vmem:[#allocation3 + $0x10] sm:$0xff]
        %v717 = vld [vmem:[#allocation3 + $0x18] sm:$0xff]
        %v718 = vld [vmem:[#allocation3 + $0x20] sm:$0xff]
        %v719 = vld [vmem:[#allocation3 + $0x28] sm:$0xff]
        %v720 = vld [vmem:[#allocation3 + $0x30] sm:$0xff]
        %v721 = vld [vmem:[#allocation3 + $0x38] sm:$0xff]
        %v722 = vld [vmem:[#allocation3 + $0x40] sm:$0xff]
        %v723 = vld [vmem:[#allocation3 + $0x48] sm:$0xff]
        %v724 = vld [vmem:[#allocation3 + $0x50] sm:$0xff]
        %v725 = vld [vmem:[#allocation3 + $0x58] sm:$0xff]
        %v726 = vld [vmem:[#allocation3 + $0x60] sm:$0xff]
        %v727 = vld [vmem:[#allocation3 + $0x68] sm:$0xff]
        %v728 = vld [vmem:[#allocation3 + $0x70] sm:$0xff]
        %v729 = vld [vmem:[#allocation3 + $0x78] sm:$0xff]
        %v730 = vld [vmem:[#allocation3 + $0x80] sm:$0xff]
        %v731 = vld [vmem:[#allocation3 + $0x88] sm:$0xff]
        %v732 = vld [vmem:[#allocation3 + $0x90] sm:$0xff]
        %v733 = vld [vmem:[#allocation3 + $0x98] sm:$0xff]
        %v735 = vsel %vm461, %v713, 0
        %737 = vmatprep.subr.mxu0 %v715
        %738 = vmatpush1.msra.mxu0 %v714
        %739 = vmatprep.subr.mxu0 %v717
        %740 = vmatpush1.msra.mxu0 %v716
        %741 = vmatprep.subr.mxu0 %v719
        %742 = vmatpush1.msra.mxu0 %v718
        %743 = vmatprep.subr.mxu0 %v721
        %744 = vmatpush1.msra.mxu0 %v720
        %745 = vmatprep.subr.mxu0 %v723
        %746 = vmatpush1.msra.mxu0 %v722
        %747 = vmatprep.subr.mxu0 %v725
        %748 = vmatpush1.msra.mxu0 %v724
        %749 = vmatprep.subr.mxu0 %v727
        %750 = vmatpush1.msra.mxu0 %v726
        %751 = vmatprep.subr.mxu0 %v729
        %752 = vmatpush1.msra.mxu0 %v728
        %753 = vmatprep.subr.mxu0 %v731
        %754 = vmatpush1.msra.mxu0 %v730
        %755 = vmatprep.subr.mxu0 %v733
        %756 = vmatpush1.msra.mxu0 %v732
        %757 = vmatprep.subr.mxu0 0.0
        %758 = vmatpush1.msra.mxu0 0.0
        %759 = vmatprep.subr.mxu0 0.0
        %760 = vmatpush1.msra.mxu0 0.0
        %761 = vmatprep.subr.mxu0 0.0
        %762 = vmatpush1.msra.mxu0 0.0
        %763 = vmatprep.subr.mxu0 0.0
        %764 = vmatpush1.msra.mxu0 0.0
        %765 = vmatprep.subr.mxu0 0.0
        %766 = vmatpush1.msra.mxu0 0.0
        %767 = vmatprep.subr.mxu0 0.0
        %768 = vmatpush1.msra.mxu0 0.0
        %769 = vmatprep.subr.mxu0 0.0
        %770 = vmatpush1.msra.mxu0 0.0
        %771 = vmatprep.subr.mxu0 0.0
        %772 = vmatpush1.msra.mxu0 0.0
        %773 = vmatprep.subr.mxu0 0.0
        %774 = vmatpush1.msra.mxu0 0.0
        %775 = vmatprep.subr.mxu0 0.0
        %776 = vmatpush1.msra.mxu0 0.0
        %777 = vmatprep.subr.mxu0 0.0
        %778 = vmatpush1.msra.mxu0 0.0
        %779 = vmatprep.subr.mxu0 0.0
        %780 = vmatpush1.msra.mxu0 0.0
        %781 = vmatprep.subr.mxu0 0.0
        %782 = vmatpush1.msra.mxu0 0.0
        %783 = vmatprep.subr.mxu0 0.0
        %784 = vmatpush1.msra.mxu0 0.0
        %785 = vmatprep.subr.mxu0 0.0
        %786 = vmatpush1.msra.mxu0 0.0
        %787 = vmatprep.subr.mxu0 0.0
        %788 = vmatpush1.msra.mxu0 0.0
        %789 = vmatprep.subr.mxu0 0.0
        %790 = vmatpush1.msra.mxu0 0.0
        %791 = vmatprep.subr.mxu0 0.0
        %792 = vmatpush1.msra.mxu0 0.0
        %793 = vmatprep.subr.mxu0 0.0
        %794 = vmatpush1.msra.mxu0 0.0
        %795 = vmatprep.subr.mxu0 0.0
        %796 = vmatpush1.msra.mxu0 0.0
        %797 = vmatprep.subr.mxu0 0.0
        %798 = vmatpush1.msra.mxu0 0.0
        %799 = vmatprep.subr.mxu0 0.0
        %800 = vmatpush1.msra.mxu0 0.0
        %801 = vmatprep.mubr.f32.mxu0 0.0
        %802 = vmatmul.mubr.f32.gmra.mrb[0].mxu0 %v735
        %v803 = vpop.f32.mrb[0].mxu0
        %v804 = vadd.f32 0.0, %v803
        %v805 = vpop.f32.mrb[0].mxu0
        %v806 = vadd.f32 0.0, %v805
        %807 = vdwg.mxu0
        %v808 = vxor.u32 %v804, 2147483648
        %v809 = vxor.u32 %v806, 2147483648
        %v810 = vmul.f32 %v808, 1.442695
        %v811 = vpow.pop %v810
        %v812 = vmul.f32 %v809, 1.442695
        %v813 = vpow.pop %v812
        %v814 = vadd.f32 %v811, 1.0
        %v815 = vadd.f32 %v813, 1.0
        %v816 = vrcp.pop %v814
        %v817 = vmul.f32 1.0, %v816
        %v818 = vrcp.pop %v815
        %v819 = vmul.f32 1.0, %v818
        %v820 = vmul.f32 %v804, %v817
        %v821 = vmul.f32 %v806, %v819
        %v823 = vcombine.high %v232, %v232
        %v825 = vadd.f32 %v820, %v232
        %v826 = vadd.f32 %v821, %v823
        %v829 = vcombine.low %v825, %v826
        %831 = vst [vmem:[%s186] sm:$0xff] %v829
        %s832 = sand.u32 %s96, 1
        %s833 = scalar_lea.sflag [#allocation6], %s832
        %s834 = sand.u32 %s96, 1
        %s835 = smul.addr %s834, 8
        %s836 = scalar_lea.vmem [#allocation7], %s835
        // Predicated region
        $region37: #{tpu_custom_call.1} parent=31 // pred_check
          %p837 = pneg %p106
        $region38: #{tpu_custom_call.1} parent=31 // pred_check_branch
          %839 = sbr.rel (%p837) target = $region40
        $region39: #{tpu_custom_call.1} parent=31 // pred_region
          %s840 = smul.u32 2, %s20
          %s842 = ssub.s32 128, 128
          %843 = vsyncadd %s833, %s842
          %s844 = smul.addr %s840, 64
          %s845 = scalar_lea.hbm %s3, %s844
          %s847 = sshll.u32 %s836, 4
          %s848 = int_to_ptr.vmem [resolvable:$true] %s847
          %850 = dma.vmem_to_hbm [thread:$0]  %s848, 128, %s845, %s833
        $region40: #{tpu_custom_call.1} parent=31 // pred_fallthru
          _
      $region32: #{tpu_custom_call.1} parent=5 // pred_fallthru
        _
      %p851 = scmp.le.s32.totalorder 2, %s15
      // Predicated region
      $region41: #{tpu_custom_call.1} parent=5 // pred_check
        %p852 = pneg %p851
      $region42: #{tpu_custom_call.1} parent=5 // pred_check_branch
        %854 = sbr.rel (%p852) target = $region44
      $region43: #{tpu_custom_call.1} parent=5 // pred_region
        %s855 = ssub.s32 %s15, 2
        // Predicated region
        $region45: #{tpu_custom_call.1} parent=43 // pred_check
          %p856 = pneg %p112
        $region46: #{tpu_custom_call.1} parent=43 // pred_check_branch
          %858 = sbr.rel (%p856) target = $region48
        $region47: #{tpu_custom_call.1} parent=43 // pred_region
          %s859 = sand.u32 %s97, 1
          %s860 = scalar_lea.sflag [#allocation6], %s859
          %s861 = sand.u32 %s97, 1
          %s862 = smul.addr %s861, 8
          %s863 = scalar_lea.vmem [#allocation7], %s862
          %864 = dma.done %s860, 128
        $region48: #{tpu_custom_call.1} parent=43 // pred_fallthru
          _
      $region44: #{tpu_custom_call.1} parent=5 // pred_fallthru
        _
    $region6: #{tpu_custom_call.1} parent=1 // loop_footer
      %s19 = sadd.s32 1, %s15
    $region7: #{tpu_custom_call.1} parent=1 // loop_footer_branch
      %14 = sbr.rel target = $region3
    $region8: #{tpu_custom_call.1} parent=1 // loop_exit
      _
    %865 = vsyncpa [#allocation5], 1
    %s866 = scalar_lea.sflag [#allocation5], 1
    %867 = vsyncpa %s866, 1
    %868 = vsyncpa [#allocation6], 1
    %s869 = scalar_lea.sflag [#allocation6], 1
    %870 = vsyncpa %s869, 1

</llo_original>
